<compile_context>
chip_gen: v6e
topology: v6e:2x2x1
jax: 0.10.0
libtpu: 0.0.40
codegen_flags: <defaults>
</compile_context>

<pallas_src>
import warnings

import jax
import jax.numpy as jnp
from jax.experimental import pallas as pl
from jax.experimental.pallas import tpu as pltpu

# Harmless "donated buffer was not usable" notes should not pollute output.
warnings.filterwarnings("ignore", message=".*donat.*")

_LANE = 128
_TILE_BYTES = 2 * 1024 * 1024          # ~2 MiB/tile: near roofline, v7x/v5e safe
_W_CANDIDATES = (8192, 4096, 2048, 1024, 512, 256, 128)


def _identity_kernel(x_ref, o_ref):
    # Hot path: straight VMEM tile copy (elementwise identity).
    o_ref[...] = x_ref[...]


def my_identity(x: jax.Array) -> jax.Array:
    """Pallas equivalent of MyIdentity.forward: returns x unchanged."""
    orig_shape = x.shape
    dtype = x.dtype
    total = x.size

    itemsize = jnp.dtype(dtype).itemsize
    sub = max(8, 32 // max(itemsize, 1))     # min sublane multiple: 8 / 16 / 32
    min_tile = sub * _LANE

    # Empty / tiny tensors: the fastest identity kernel is no kernel at all.
    if total == 0 or total < min_tile:
        return x

    # ---- lane-dense (rows, W) slab; prefer a zero-padding factorization ----
    W = None
    for cand in _W_CANDIDATES:
        if total % (cand * sub) == 0:
            W = cand
            break

    if W is not None:
        pad = 0
        rows = total // W                    # multiple of `sub` by construction
        x2d = x.reshape(rows, W)             # pure bitcast, no extra HBM pass
    else:
        W = 512
        padded_total = pl.cdiv(total, W * sub) * (W * sub)
        pad = padded_total - total
        x2d = jnp.pad(x.reshape(-1), (0, pad)).reshape(padded_total // W, W)
        rows = padded_total // W

    # ---- tile size: ~2 MiB, multiple of the dtype's sublane quantum ----
    block_rows = max(sub, (_TILE_BYTES // (W * itemsize)) // sub * sub)
    block_rows = min(block_rows, rows)
    # Give megacore (v7x: 2 TCs) at least 2 grid steps when cheaply possible.
    if rows // block_rows < 2 and rows >= 2 * sub:
        block_rows = max(sub, ((rows // 2) // sub) * sub)
    grid = (pl.cdiv(rows, block_rows),)      # ragged last block handled by Pallas

    out2d = pl.pallas_call(
        _identity_kernel,
        out_shape=jax.ShapeDtypeStruct((rows, W), dtype),
        grid_spec=pltpu.PrefetchScalarGridSpec(
            num_scalar_prefetch=0,
            grid=grid,
            in_specs=[pl.BlockSpec((block_rows, W), lambda i: (i, 0))],
            out_specs=pl.BlockSpec((block_rows, W), lambda i: (i, 0)),
        ),
        input_output_aliases={0: 0},         # output reuses x's HBM buffer when donated
        compiler_params=pltpu.CompilerParams(
            dimension_semantics=("parallel",),
            vmem_limit_bytes=32 * 1024 * 1024,
        ),
    )(x2d)

    out = out2d.reshape(-1)
    if pad:
        out = out[:total]
    return out.reshape(orig_shape)


if __name__ == "__main__":
    key = jax.random.PRNGKey(0)
    shape, dtype = (2, 4, 16, 16), jnp.float32

    x = jax.random.normal(key, shape, dtype=dtype)

    # Production path: donate x so the aliased output reuses its HBM buffer.
    identity_fn = jax.jit(my_identity, donate_argnums=0)
    y = identity_fn(x)
    jax.block_until_ready(y)

    # x was donated; regenerate the identical (deterministic) reference values.
    x_expected = jax.random.normal(key, shape, dtype=dtype)
    assert y.shape == x_expected.shape and y.dtype == x_expected.dtype
    assert bool(jnp.all(y == x_expected))
    print("KERNEL_OK")
</pallas_src>

<mosaic_0001>
module attributes {stable_mosaic.version = 11 : i64} {
  func.func @_identity_kernel(%arg0: i32, %arg1: memref<8x256xf32, #tpu.memory_space<vmem>>, %arg2: memref<8x256xf32, #tpu.memory_space<vmem>>) attributes {dimension_semantics = [#tpu.dimension_semantics<parallel>], iteration_bounds = array<i64: 1>, scalar_prefetch = 0 : i64, scratch_operands = 0 : i64, tpu.core_type = #tpu.core_type<tc>, window_params = [{transform_indices = @transform_0, window_bounds = array<i64: 8, 256>}, {transform_indices = @transform_1, window_bounds = array<i64: 8, 256>}]} {
    %c0 = arith.constant 0 : index
    %c0_0 = arith.constant 0 : index
    %0 = vector.load %arg1[%c0, %c0_0] : memref<8x256xf32, #tpu.memory_space<vmem>>, vector<8x256xf32>
    %c0_1 = arith.constant 0 : index
    %c0_2 = arith.constant 0 : index
    %1 = vector.load %arg2[%c0_1, %c0_2] : memref<8x256xf32, #tpu.memory_space<vmem>>, vector<8x256xf32>
    tpu.vector_store %arg2[%c0_1, %c0_2], %0 {strides = array<i32>} : memref<8x256xf32, #tpu.memory_space<vmem>>, vector<8x256xf32>,
    return
  }
  func.func @transform_0(%arg0: i32) -> (i32, i32) {
    %c0_i32 = arith.constant 0 : i32
    %c0_i32_0 = arith.constant 0 : i32
    return %arg0, %c0_i32 : i32, i32
  }
  func.func @transform_1(%arg0: i32) -> (i32, i32) {
    %c0_i32 = arith.constant 0 : i32
    %c0_i32_0 = arith.constant 0 : i32
    return %arg0, %c0_i32 : i32, i32
  }
}

</mosaic_0001>

<llo_original>
// kernel: my_identity.1
$region0: #{my_identity.1}
  #allocation0 [shape = 'u32[]', space=smem, size = 0x4, offset = 0x4, fixed_abs, tag = 'smem constant byte address 0x4 - core index']
  #allocation1 [shape = 'u32[144,128]{1,0:T(1,128)}', space=vmem, size = 0x12000, scoped, tag = 'internal scratch']
  %s0 = inlined_call_operand.vmem [shape: f32[8,256], index: 0, kind: input, shape index: {}, may-alias: {0,1}]
  %s1 = inlined_call_operand.vmem [shape: f32[8,256], index: 1, kind: output, shape index: {}, may-alias: {0,1}]
  %s2 = sld [smem:[#allocation0]]
  $region14: #{my_identity.1} parent=0
    _
  %s4 = ssub.s32 1, %s2
  %s5 = scalar_select 0, %s4, %s2
  // Predicated region
  $region2: #{my_identity.1} parent=0 // pred_check
    _
  $region3: #{my_identity.1} parent=0 // pred_check_branch
    %7 = sbr.rel (0) target = $region5
  $region4: #{my_identity.1} parent=0 // pred_region
    _
  $region5: #{my_identity.1} parent=0 // pred_fallthru
    _
  %v8 = vld [vmem:[%s0] sm:$0xff]
  %v9 = vld [vmem:[%s0 + $0x8] sm:$0xff]
  %10 = vst [vmem:[%s1] sm:$0xff] %v8
  %11 = vst [vmem:[%s1 + $0x8] sm:$0xff] %v9
  // Predicated region
  $region6: #{my_identity.1} parent=0 // pred_check
    _
  $region7: #{my_identity.1} parent=0 // pred_check_branch
    %13 = sbr.rel (0) target = $region9
  $region8: #{my_identity.1} parent=0 // pred_region
    _
  $region9: #{my_identity.1} parent=0 // pred_fallthru
    _
  // Predicated region
  $region10: #{my_identity.1} parent=0 // pred_check
    _
  $region11: #{my_identity.1} parent=0 // pred_check_branch
    %15 = sbr.rel (0) target = $region13
  $region12: #{my_identity.1} parent=0 // pred_region
    _
  $region13: #{my_identity.1} parent=0 // pred_fallthru
    _

</llo_original>
